<compile_context>
chip_gen: v7x
topology: tpu7x:2x2x1
jax: 0.10.0
libtpu: 0.0.40
codegen_flags: <defaults>
</compile_context>

<pallas_src>
import math
import functools

import numpy as np
import jax
import jax.numpy as jnp
from jax.experimental import pallas as pl
from jax.experimental.pallas import tpu as pltpu


# ---------------------------------------------------------------------------
# Host-side construction of the fused (pad + blur + nearest-select) operators
# ---------------------------------------------------------------------------

def _gaussian_1d(scale: float):
    """1-D Gaussian taps matching the PyTorch __init__ (2-D kernel is separable)."""
    sigma = (1.0 / scale - 1.0) / 2.0
    kernel_size = 2 * round(sigma * 4) + 1
    ka = kernel_size // 2
    kb = kernel_size - ka - 1
    t = np.arange(kernel_size, dtype=np.float64) - (kernel_size - 1) / 2.0
    g = np.exp(-(t ** 2) / (2.0 * sigma ** 2))
    g = g / g.sum()
    return g.astype(np.float32), kernel_size, ka, kb


def _nearest_src_indices(out_size: int, in_size: int, scale: float):
    """PyTorch nearest (scale_factor path): src = min(floor(dst / scale), in-1)."""
    # TODO(synk): PyTorch computes this index (and the output size) in float32;
    # for scales whose reciprocal is not exactly representable (e.g. 1/3) the
    # result can differ by one pixel from this float64 computation.
    idx = np.floor(np.arange(out_size, dtype=np.float64) * (1.0 / scale)).astype(np.int64)
    return np.minimum(idx, in_size - 1)


def _axis_operator(in_size: int, out_size: int, scale: float, g1d, ka: int):
    """(out_size, in_size) operator = nearest-select rows of the banded blur.

    blur[i, j] = g1d[j - i + ka] for j in [i-ka, i-ka+K-1] ∩ [0, in_size);
    out-of-range taps contribute zero, which is exactly the F.pad zero padding.
    """
    K = g1d.shape[0]
    blur = np.zeros((in_size, in_size), np.float32)
    rows = np.arange(in_size)
    for p in range(K):
        cols = rows + p - ka
        valid = (cols >= 0) & (cols < in_size)
        blur[rows[valid], cols[valid]] = g1d[p]
    src = _nearest_src_indices(out_size, in_size, scale)
    return blur[src, :]                     # (out_size, in_size)


# ---------------------------------------------------------------------------
# Blocking / VMEM budgeting
# ---------------------------------------------------------------------------

def _choose_blocking(nc, h, w, hout, woutp, x_itemsize, out_itemsize,
                     compute_itemsize, cblk=None):
    """Pick the channel-block size and a matching vmem_limit_bytes."""
    try:
        capacity = int(getattr(pltpu.get_tpu_info(), "vmem_capacity_bytes", 0))
    except Exception:
        capacity = 0
    if capacity <= 0:
        capacity = 64 << 20          # conservative default = v7x per-TC VMEM

    # Per-channel VMEM footprint: double-buffered in/out blocks + f32
    # intermediates (+ an in-kernel cast copy when compute dtype != x dtype).
    per_chan = (2 * h * w * x_itemsize
                + 2 * hout * woutp * out_itemsize
                + h * woutp * 4
                + hout * woutp * 4
                + (h * w * compute_itemsize if compute_itemsize != x_itemsize else 0))
    # A/B blocks (double-buffered by the default pipeline) + small slack.
    fixed = 2 * (hout * h + w * woutp) * compute_itemsize + (1 << 20)

    if cblk is None:
        # ~60% of physical VMEM for blocks: ~38 MiB on v7x (64 MiB/TC),
        # ~77 MiB on v5e/v6e (128 MiB), capped at 96 MiB.
        budget = min(int(capacity * 0.6), 96 << 20)
        cap = max(1, (budget - fixed) // per_chan)
        cap = min(cap, nc)
        if nc >= 2:
            cap = min(cap, (nc + 1) // 2)   # >= 2 grid steps => both v7x TCs busy
        best = 1
        for d in range(1, int(math.isqrt(nc)) + 1):
            if nc % d == 0:
                for e in (d, nc // d):
                    if e <= cap:
                        best = max(best, e)
        if best * 4 >= cap:
            cblk = best                     # exact tiling, no ragged block
        else:
            # Pathological NC factorization: use a ragged last block; Pallas
            # masks the out-of-range channel rows on load/store (still no
            # extra HBM padding pass).
            cblk = cap
    cblk = int(max(1, min(cblk, nc)))
    steps = int(pl.cdiv(nc, cblk))

    footprint = fixed + cblk * per_chan
    vmem_limit = int(min(int(capacity * 0.85),
                         max(32 << 20, footprint + (8 << 20))))
    return cblk, steps, vmem_limit


# ---------------------------------------------------------------------------
# Pallas kernel: out[c] = A @ x[c] @ B for a block of channels (pure MXU)
# ---------------------------------------------------------------------------

def _aa_kernel(x_ref, a_ref, b_ref, o_ref, *, compute_dtype):
    cblk, h, w = x_ref.shape

    x = x_ref[...]
    if x.dtype != compute_dtype:
        x = x.astype(compute_dtype)

    # W-side blur+select first: one flat 2-D MXU matmul.  The reshape
    # (cblk, H, W) -> (cblk*H, W) is a free view (it only merges leading
    # dims), unlike the Hout-dependent reshape an H-first order would need.
    t = jnp.dot(x.reshape(cblk * h, w), b_ref[...],
                preferred_element_type=jnp.float32)          # (cblk*H, Woutp) f32
    t = t.reshape(cblk, h, b_ref.shape[1])
    if compute_dtype != jnp.float32:
        t = t.astype(compute_dtype)

    # H-side blur+select: A stays un-broadcast (stationary across the channel
    # batch); f32 accumulation.
    out = jnp.einsum('oh,chw->cow', a_ref[...], t,
                     preferred_element_type=jnp.float32)     # (cblk, Hout, Woutp)
    o_ref[...] = out.astype(o_ref.dtype)


def anti_alias_interpolation2d(x, scale: float, *, compute_dtype=None, cblk=None):
    """Pallas implementation of AntiAliasInterpolation2d.forward (NCHW input)."""
    if scale > 1.0:
        raise ValueError("Scale factor must be <= 1.0 for anti-aliased downsampling")
    if scale == 1.0:
        return x

    N, C, H, W = x.shape
    if compute_dtype is None:
        # bf16 producers keep the dominant HBM read at half width; f32 keeps
        # bit-tight agreement with the PyTorch reference.
        compute_dtype = jnp.bfloat16 if x.dtype == jnp.dtype(jnp.bfloat16) else jnp.float32
    compute_dtype = np.dtype(compute_dtype)

    g1d, _, ka, _ = _gaussian_1d(scale)
    Hout = int(math.floor(H * scale))
    Wout = int(math.floor(W * scale))
    Woutp = ((Wout + 127) // 128) * 128     # lane-dense (unmasked) output stores

    A = _axis_operator(H, Hout, scale, g1d, ka)              # (Hout, H)
    B = np.zeros((W, Woutp), np.float32)
    B[:, :Wout] = _axis_operator(W, Wout, scale, g1d, ka).T  # (W, Woutp), zero-padded
    # Note: in the bf16 path A/B are cast to bf16 (blur rows no longer sum to
    # exactly 1) -> documented looser tolerance; accumulation stays f32.

    NC = N * C
    cblk, steps, vmem_limit = _choose_blocking(
        NC, H, W, Hout, Woutp,
        x_itemsize=x.dtype.itemsize, out_itemsize=x.dtype.itemsize,
        compute_itemsize=compute_dtype.itemsize, cblk=cblk)

    xf = x.reshape(NC, H, W)                # free metadata reshape, no HBM pass

    out = pl.pallas_call(
        functools.partial(_aa_kernel, compute_dtype=compute_dtype),
        out_shape=jax.ShapeDtypeStruct((NC, Hout, Woutp), x.dtype),
        grid=(steps,),
        in_specs=[
            # One block of cblk images per grid step (unpadded input).
            pl.BlockSpec((cblk, H, W), lambda i: (i, 0, 0)),
            # Constant-index fused blur+select operators (fetched once per core).
            pl.BlockSpec((Hout, H), lambda i: (0, 0)),
            pl.BlockSpec((W, Woutp), lambda i: (0, 0)),
        ],
        out_specs=pl.BlockSpec((cblk, Hout, Woutp), lambda i: (i, 0, 0)),
        compiler_params=pltpu.CompilerParams(
            dimension_semantics=("parallel",),
            vmem_limit_bytes=vmem_limit),
    )(xf, jnp.asarray(A, compute_dtype), jnp.asarray(B, compute_dtype))

    if Woutp != Wout:
        out = out[:, :, :Wout]              # cheap: touches only the small output
    return out.reshape(N, C, Hout, Wout)


# ---------------------------------------------------------------------------
# Pure-JAX reference mirroring the PyTorch forward (pad + 2D conv + nearest)
# ---------------------------------------------------------------------------

def _reference(x, scale: float):
    if scale == 1.0:
        return x
    N, C, H, W = x.shape
    sigma = (1.0 / scale - 1.0) / 2.0
    K = 2 * round(sigma * 4) + 1
    ka = K // 2
    kb = K - ka - 1
    t = np.arange(K, dtype=np.float32) - (K - 1) / 2.0
    xx, yy = np.meshgrid(t, t, indexing="ij")
    w2d = np.exp(-(xx ** 2 + yy ** 2) / (2.0 * sigma ** 2)).astype(np.float32)
    w2d = w2d / w2d.sum()
    xp = jnp.pad(x, ((0, 0), (0, 0), (ka, kb), (ka, kb)))
    acc = jnp.zeros((N, C, H, W), jnp.float32)
    for p in range(K):
        for q in range(K):
            acc = acc + float(w2d[p, q]) * xp[:, :, p:p + H, q:q + W]
    Hout = int(math.floor(H * scale))
    Wout = int(math.floor(W * scale))
    ri = _nearest_src_indices(Hout, H, scale)
    ci = _nearest_src_indices(Wout, W, scale)
    return acc[:, :, ri][:, :, :, ci].astype(x.dtype)


if __name__ == "__main__":
    key = jax.random.PRNGKey(0)
    # channels=4, scale=0.5  ->  sigma=0.5, kernel_size=5, ka=kb=2
    x = jax.random.normal(key, (2, 4, 16, 16), dtype=jnp.float32)
    scale = 0.5

    y_ref = _reference(x, scale)

    # f32 MXU path (default): tight agreement with the PyTorch-style reference.
    y = anti_alias_interpolation2d(x, scale)
    y = jax.block_until_ready(y)
    assert y.shape == (2, 4, 8, 8), y.shape
    if not np.allclose(np.asarray(y), np.asarray(y_ref), rtol=1e-5, atol=1e-5):
        raise AssertionError("Pallas f32 result does not match reference")

    # bf16 producer path (v5e/v6e/v7x throughput option): the input arrives in
    # bf16 in HBM, accumulation stays f32, looser tolerance.
    x16 = x.astype(jnp.bfloat16)
    y16 = anti_alias_interpolation2d(x16, scale)
    y16 = jax.block_until_ready(y16)
    y16_f = np.asarray(y16.astype(jnp.float32))
    ref16 = np.asarray(_reference(x16.astype(jnp.float32), scale))
    if not np.allclose(y16_f, ref16, rtol=3e-2, atol=3e-2):
        raise AssertionError("Pallas bf16 result does not match reference")

    print("KERNEL_OK")
</pallas_src>

<mosaic_0001>
module attributes {stable_mosaic.version = 11 : i64} {
  func.func @_aa_kernel(%arg0: i32, %arg1: memref<4x16x16xf32, #tpu.memory_space<vmem>>, %arg2: memref<8x16xf32, #tpu.memory_space<vmem>>, %arg3: memref<16x128xf32, #tpu.memory_space<vmem>>, %arg4: memref<4x8x128xf32, #tpu.memory_space<vmem>>) attributes {dimension_semantics = [#tpu.dimension_semantics<parallel>], iteration_bounds = array<i64: 2>, scalar_prefetch = 0 : i64, scratch_operands = 0 : i64, tpu.core_type = #tpu.core_type<tc>, window_params = [{transform_indices = @transform_0, window_bounds = array<i64: 4, 16, 16>}, {pipeline_mode = #tpu.pipeline_mode<synchronous>, transform_indices = @transform_1, window_bounds = array<i64: 8, 16>}, {pipeline_mode = #tpu.pipeline_mode<synchronous>, transform_indices = @transform_2, window_bounds = array<i64: 16, 128>}, {transform_indices = @transform_3, window_bounds = array<i64: 4, 8, 128>}]} {
    %c0 = arith.constant 0 : index
    %c0_0 = arith.constant 0 : index
    %c0_1 = arith.constant 0 : index
    %0 = vector.load %arg1[%c0, %c0_0, %c0_1] : memref<4x16x16xf32, #tpu.memory_space<vmem>>, vector<4x16x16xf32>
    %1 = vector.shape_cast %0 : vector<4x16x16xf32> to vector<64x16xf32>
    %c0_2 = arith.constant 0 : index
    %c0_3 = arith.constant 0 : index
    %2 = vector.load %arg3[%c0_2, %c0_3] : memref<16x128xf32, #tpu.memory_space<vmem>>, vector<16x128xf32>
    %cst = arith.constant dense<0.000000e+00> : vector<64x128xf32>
    %3 = tpu.matmul %1, %2, %cst {dimension_numbers = #tpu.dot_dimension_numbers<[1], [0], [0], [1], [0, 0, 1, 1], [], []>} : vector<64x16xf32>, vector<16x128xf32>, vector<64x128xf32> -> vector<64x128xf32>
    %4 = vector.shape_cast %3 : vector<64x128xf32> to vector<4x16x128xf32>
    %c0_4 = arith.constant 0 : index
    %c0_5 = arith.constant 0 : index
    %5 = vector.load %arg2[%c0_4, %c0_5] : memref<8x16xf32, #tpu.memory_space<vmem>>, vector<8x16xf32>
    "tpu.trace_start"() <{level = 10 : i32, message = "oh,chw->cow"}> : () -> ()
    %cst_6 = arith.constant dense<0.000000e+00> : vector<4x128x8xf32>
    %6 = tpu.matmul %4, %5, %cst_6 {dimension_numbers = #tpu.dot_dimension_numbers<[1], [1], [0, 2], [0], [0, 0, 0, 2, 1, 0], [], []>} : vector<4x16x128xf32>, vector<8x16xf32>, vector<4x128x8xf32> -> vector<4x128x8xf32>
    %7 = tpu.transpose %6, [0, 2, 1] : vector<4x128x8xf32> -> vector<4x8x128xf32>
    "tpu.trace_stop"() : () -> ()
    %c0_7 = arith.constant 0 : index
    %c0_8 = arith.constant 0 : index
    %c0_9 = arith.constant 0 : index
    %8 = vector.load %arg4[%c0_7, %c0_8, %c0_9] : memref<4x8x128xf32, #tpu.memory_space<vmem>>, vector<4x8x128xf32>
    tpu.vector_store %arg4[%c0_7, %c0_8, %c0_9], %7 {strides = array<i32>} : memref<4x8x128xf32, #tpu.memory_space<vmem>>, vector<4x8x128xf32>,
    return
  }
  func.func @transform_0(%arg0: i32) -> (i32, i32, i32) {
    %c0_i32 = arith.constant 0 : i32
    %c0_i32_0 = arith.constant 0 : i32
    %c0_i32_1 = arith.constant 0 : i32
    return %arg0, %c0_i32, %c0_i32_0 : i32, i32, i32
  }
  func.func @transform_1(%arg0: i32) -> (i32, i32) {
    %c0_i32 = arith.constant 0 : i32
    %c0_i32_0 = arith.constant 0 : i32
    %c0_i32_1 = arith.constant 0 : i32
    return %c0_i32, %c0_i32_0 : i32, i32
  }
  func.func @transform_2(%arg0: i32) -> (i32, i32) {
    %c0_i32 = arith.constant 0 : i32
    %c0_i32_0 = arith.constant 0 : i32
    %c0_i32_1 = arith.constant 0 : i32
    return %c0_i32, %c0_i32_0 : i32, i32
  }
  func.func @transform_3(%arg0: i32) -> (i32, i32, i32) {
    %c0_i32 = arith.constant 0 : i32
    %c0_i32_0 = arith.constant 0 : i32
    %c0_i32_1 = arith.constant 0 : i32
    return %arg0, %c0_i32, %c0_i32_0 : i32, i32, i32
  }
}

</mosaic_0001>

<llo_original>
// kernel: tpu_custom_call.1
$region0: #{tpu_custom_call.1}
  #allocation0 [shape = 'u32[]', space=smem, size = 0x4, offset = 0x4, fixed_abs, tag = 'smem constant byte address 0x4 - core index']
  #allocation1 [shape = 'u32[144,128]{1,0:T(1,128)}', space=vmem, size = 0x12000, scoped, tag = 'internal scratch']
  %s0 = inlined_call_operand.hbm [shape: f32[8,16,16], index: 0, kind: input, shape index: {}]
  %s1 = inlined_call_operand.hbm [shape: f32[8,16], index: 1, kind: input, shape index: {}]
  %s2 = inlined_call_operand.hbm [shape: f32[16,128], index: 2, kind: input, shape index: {}]
  %s3 = inlined_call_operand.hbm [shape: f32[8,8,128], index: 3, kind: output, shape index: {}]
  %s4 = sld [smem:[#allocation0]]
  $region57: #{tpu_custom_call.1} parent=0
    _
  %s6 = ssub.s32 1, %s4
  %s7 = scalar_select 0, %s6, %s4
  $region1: #{tpu_custom_call.1} parent=0
    #allocation2 [shape = 'u8[65536]{0}', space=vmem, size = 0x10000, scoped, tag = 'input window, operand 0']
    #allocation3 [shape = 's32[2]{0}', space=sflag, size = 0x8, scoped, tag = 'scoped memory for tpu_custom_call.1']
    #allocation4 [shape = 's32[2]{0}', space=sflag, size = 0x8, scoped, tag = 'scoped memory for tpu_custom_call.1']
    #allocation5 [shape = 'u8[4096]{0}', space=vmem, size = 0x1000, scoped, tag = 'input window, operand 1, single buffered']
    #allocation6 [shape = 's32[1]{0}', space=sflag, size = 0x4, scoped, tag = 'scoped memory for tpu_custom_call.1']
    #allocation7 [shape = 'u8[8192]{0}', space=vmem, size = 0x2000, scoped, tag = 'input window, operand 2, single buffered']
    #allocation8 [shape = 'u8[32768]{0}', space=vmem, size = 0x8000, scoped, tag = 'output window, operand 0']
    %8 = vsyncpa [#allocation3], 0
    %s9 = scalar_lea.sflag [#allocation3], 1
    %10 = vsyncpa %s9, 0
    %11 = vsyncpa [#allocation6], 0
    %12 = vsyncpa [#allocation4], 0
    %s13 = scalar_lea.sflag [#allocation4], 1
    %14 = vsyncpa %s13, 0
    loop: start=0, step=1, limit=4
    $region2: #{tpu_custom_call.1} parent=1 // loop_pre_header
      _
    $region3: #{tpu_custom_call.1} parent=1 // loop_header
      %s16 = sphi 0, %s20
      %p17 = scmp.ge.s32.totalorder %s16, 4
      %s26 = sphi 0, %s28
      %s29 = sphi 0, %s26
      %s30 = sphi 0, %s29
      %s46 = sphi 0, %s30
      %s50 = sphi 0, %s50
      %s52 = sphi 0, %s50
      %s53 = sphi 0, %s52
      %s67 = sphi 0, %s53
      %s71 = sphi 0, %s71
      %s73 = sphi 0, %s71
      %s74 = sphi 0, %s73
      %s88 = sphi 0, %s74
      %s94 = sphi 0, %s96
      %s97 = sphi 0, %s94
      %s98 = sphi 0, %s97
      %s114 = sphi 0, %s98
    $region4: #{tpu_custom_call.1} parent=1 // loop_header_branch
      %19 = sbr.rel (%p17) target = $region8
    $region5: #{tpu_custom_call.1} parent=1 // loop_body
      %s21 = ssub.s32 %s16, 1
      %s22 = ssub.s32 %s16, 2
      %s23 = sadd.s32 %s16, 1
      %s24 = ssub.s32 %s16, %s23
      %p25 = scmp.eq.s32.totalorder %s24, 0
      %s27 = sadd.s32 %s26, 1
      %s28 = scalar_select %p25, %s26, %s27
      %p31 = pneg %p25
      %p32 = scmp.eq.s32.totalorder %s16, 1
      %p33 = por %p31, %p32
      %p34 = scmp.ne.s32.totalorder %s26, %s29
      %p35 = scmp.eq.s32.totalorder %s16, 0
      %p36 = por %p34, %p35
      %p37 = scmp.ne.s32.totalorder %s26, %s29
      %p38 = scmp.eq.s32.totalorder %s21, 1
      %p39 = por %p37, %p38
      %p40 = scmp.ne.s32.totalorder %s29, %s30
      %p41 = scmp.eq.s32.totalorder %s21, 0
      %p42 = por %p40, %p41
      %p43 = scmp.ne.s32.totalorder %s29, %s30
      %p44 = scmp.eq.s32.totalorder %s22, 1
      %p45 = por %p43, %p44
      %p47 = scmp.ne.s32.totalorder %s30, %s46
      %p48 = scmp.eq.s32.totalorder %s22, 0
      %p49 = por %p47, %p48
      %s51 = sadd.s32 %s50, 1
      %p54 = scmp.eq.s32.totalorder %s16, 1
      %p55 = scmp.ne.s32.totalorder %s50, %s52
      %p56 = scmp.eq.s32.totalorder %s16, 0
      %p57 = por %p55, %p56
      %p58 = scmp.ne.s32.totalorder %s50, %s52
      %p59 = scmp.eq.s32.totalorder %s21, 1
      %p60 = por %p58, %p59
      %p61 = scmp.ne.s32.totalorder %s52, %s53
      %p62 = scmp.eq.s32.totalorder %s21, 0
      %p63 = por %p61, %p62
      %p64 = scmp.ne.s32.totalorder %s52, %s53
      %p65 = scmp.eq.s32.totalorder %s22, 1
      %p66 = por %p64, %p65
      %p68 = scmp.ne.s32.totalorder %s53, %s67
      %p69 = scmp.eq.s32.totalorder %s22, 0
      %p70 = por %p68, %p69
      %s72 = sadd.s32 %s71, 1
      %p75 = scmp.eq.s32.totalorder %s16, 1
      %p76 = scmp.ne.s32.totalorder %s71, %s73
      %p77 = scmp.eq.s32.totalorder %s16, 0
      %p78 = por %p76, %p77
      %p79 = scmp.ne.s32.totalorder %s71, %s73
      %p80 = scmp.eq.s32.totalorder %s21, 1
      %p81 = por %p79, %p80
      %p82 = scmp.ne.s32.totalorder %s73, %s74
      %p83 = scmp.eq.s32.totalorder %s21, 0
      %p84 = por %p82, %p83
      %p85 = scmp.ne.s32.totalorder %s73, %s74
      %p86 = scmp.eq.s32.totalorder %s22, 1
      %p87 = por %p85, %p86
      %p89 = scmp.ne.s32.totalorder %s74, %s88
      %p90 = scmp.eq.s32.totalorder %s22, 0
      %p91 = por %p89, %p90
      %s92 = ssub.s32 %s16, %s23
      %p93 = scmp.eq.s32.totalorder %s92, 0
      %s95 = sadd.s32 %s94, 1
      %s96 = scalar_select %p93, %s94, %s95
      %p99 = pneg %p93
      %p100 = scmp.eq.s32.totalorder %s16, 1
      %p101 = por %p99, %p100
      %p102 = scmp.ne.s32.totalorder %s94, %s97
      %p103 = scmp.eq.s32.totalorder %s16, 0
      %p104 = por %p102, %p103
      %p105 = scmp.ne.s32.totalorder %s94, %s97
      %p106 = scmp.eq.s32.totalorder %s21, 1
      %p107 = por %p105, %p106
      %p108 = scmp.ne.s32.totalorder %s97, %s98
      %p109 = scmp.eq.s32.totalorder %s21, 0
      %p110 = por %p108, %p109
      %p111 = scmp.ne.s32.totalorder %s97, %s98
      %p112 = scmp.eq.s32.totalorder %s22, 1
      %p113 = por %p111, %p112
      %p115 = scmp.ne.s32.totalorder %s98, %s114
      %p116 = scmp.eq.s32.totalorder %s22, 0
      %p117 = por %p115, %p116
      %p118 = scmp.le.s32.totalorder 1, %s16
      %p119 = scmp.lt.s32.totalorder %s16, 3
      %p120 = pnand %p118, %p119
      %p121 = pneg %p120
      // Predicated region
      $region9: #{tpu_custom_call.1} parent=5 // pred_check
        _
      $region10: #{tpu_custom_call.1} parent=5 // pred_check_branch
        %123 = sbr.rel (%p120) target = $region12
      $region11: #{tpu_custom_call.1} parent=5 // pred_region
        %s124 = ssub.s32 %s16, 1
        // Predicated region
        $region13: #{tpu_custom_call.1} parent=11 // pred_check
          %p125 = pneg %p63
        $region14: #{tpu_custom_call.1} parent=11 // pred_check_branch
          %127 = sbr.rel (%p125) target = $region16
        $region15: #{tpu_custom_call.1} parent=11 // pred_region
          %s129 = ssub.s32 128, 128
          %130 = vsyncadd [#allocation6], %s129
          %s132 = sshll.u32 [#allocation5], 4
          %s133 = int_to_ptr.vmem [resolvable:$true] %s132
          %135 = dma.hbm_to_vmem [thread:$0]  %s1, 128, %s133, [#allocation6]
        $region16: #{tpu_custom_call.1} parent=11 // pred_fallthru
          _
        // Predicated region
        $region17: #{tpu_custom_call.1} parent=11 // pred_check
          %p136 = pneg %p84
        $region18: #{tpu_custom_call.1} parent=11 // pred_check_branch
          %138 = sbr.rel (%p136) target = $region20
        $region19: #{tpu_custom_call.1} parent=11 // pred_region
          %s140 = ssub.s32 256, 256
          %141 = vsyncadd [#allocation6], %s140
          %s142 = sshll.u32 [#allocation7], 4
          %s143 = int_to_ptr.vmem [resolvable:$true] %s142
          %148 = dma.hbm_to_vmem [thread:$0]  %s2, 256, %s143, [#allocation6], 128, 128, 8
        $region20: #{tpu_custom_call.1} parent=11 // pred_fallthru
          _
      $region12: #{tpu_custom_call.1} parent=5 // pred_fallthru
        _
      %p149 = scmp.lt.s32.totalorder %s16, 2
      // Predicated region
      $region21: #{tpu_custom_call.1} parent=5 // pred_check
        %p150 = pneg %p149
      $region22: #{tpu_custom_call.1} parent=5 // pred_check_branch
        %152 = sbr.rel (%p150) target = $region24
      $region23: #{tpu_custom_call.1} parent=5 // pred_region
        // Predicated region
        $region25: #{tpu_custom_call.1} parent=23 // pred_check
          %p153 = pneg %p36
        $region26: #{tpu_custom_call.1} parent=23 // pred_check_branch
          %155 = sbr.rel (%p153) target = $region28
        $region27: #{tpu_custom_call.1} parent=23 // pred_region
          %s156 = sand.u32 %s26, 1
          %s157 = scalar_lea.sflag [#allocation3], %s156
          %s158 = sand.u32 %s26, 1
          %s159 = smul.addr %s158, 64
          %s160 = scalar_lea.vmem [#allocation2], %s159
          %s161 = smul.u32 4, %s16
          %s163 = ssub.s32 1024, 1024
          %164 = vsyncadd %s157, %s163
          %s165 = smul.addr %s161, 2
          %s166 = smul.addr %s165, 128
          %s167 = scalar_lea.hbm %s0, %s166
          %s168 = sshll.u32 %s160, 4
          %s169 = int_to_ptr.vmem [resolvable:$true] %s168
          %174 = dma.hbm_to_vmem [thread:$0]  %s167, 1024, %s169, %s157, 128, 128, 8
        $region28: #{tpu_custom_call.1} parent=23 // pred_fallthru
          _
      $region24: #{tpu_custom_call.1} parent=5 // pred_fallthru
        _
      %p175 = scmp.le.s32.totalorder 1, %s16
      %p176 = scmp.lt.s32.totalorder %s16, 3
      %p177 = pnand %p175, %p176
      %p178 = pneg %p177
      // Predicated region
      $region29: #{tpu_custom_call.1} parent=5 // pred_check
        _
      $region30: #{tpu_custom_call.1} parent=5 // pred_check_branch
        %180 = sbr.rel (%p177) target = $region32
      $region31: #{tpu_custom_call.1} parent=5 // pred_region
        %s181 = ssub.s32 %s16, 1
        %s182 = sand.u32 %s29, 1
        %s183 = scalar_lea.sflag [#allocation3], %s182
        %s184 = sand.u32 %s29, 1
        %s185 = smul.addr %s184, 64
        %s186 = scalar_lea.vmem [#allocation2], %s185
        // Predicated region
        $region33: #{tpu_custom_call.1} parent=31 // pred_check
          %p187 = pneg %p42
        $region34: #{tpu_custom_call.1} parent=31 // pred_check_branch
          %189 = sbr.rel (%p187) target = $region36
        $region35: #{tpu_custom_call.1} parent=31 // pred_region
          %190 = dma.done %s183, 1024
        $region36: #{tpu_custom_call.1} parent=31 // pred_fallthru
          _
        // Predicated region
        $region37: #{tpu_custom_call.1} parent=31 // pred_check
          %p191 = pneg %p63
        $region38: #{tpu_custom_call.1} parent=31 // pred_check_branch
          %193 = sbr.rel (%p191) target = $region40
        $region39: #{tpu_custom_call.1} parent=31 // pred_region
          %194 = dma.done [#allocation6], 128
        $region40: #{tpu_custom_call.1} parent=31 // pred_fallthru
          _
        // Predicated region
        $region41: #{tpu_custom_call.1} parent=31 // pred_check
          %p195 = pneg %p84
        $region42: #{tpu_custom_call.1} parent=31 // pred_check_branch
          %197 = sbr.rel (%p195) target = $region44
        $region43: #{tpu_custom_call.1} parent=31 // pred_region
          %198 = dma.done [#allocation6], 256
        $region44: #{tpu_custom_call.1} parent=31 // pred_fallthru
          _
        %s199 = sand.u32 %s29, 1
        %s200 = scalar_lea.sflag [#allocation3], %s199
        %s201 = sand.u32 %s29, 1
        %s202 = smul.addr %s201, 64
        %s203 = scalar_lea.vmem [#allocation2], %s202
        %p204 = pneg %p42
        %p205 = pneg %p39
        %p206 = pneg %p63
        %p207 = pneg %p60
        %p208 = pneg %p84
        %p209 = pneg %p81
        %p210 = pneg %p110
        %p211 = pneg %p107
        %s212 = sand.u32 %s97, 1
        %s213 = scalar_lea.sflag [#allocation4], %s212
        %s214 = sand.u32 %s97, 1
        %s215 = smul.addr %s214, 32
        %s216 = scalar_lea.vmem [#allocation8], %s215
        %s217 = smul.u32 4, %s21
        %s218 = smul.u32 4, %s21
        %v219 = vld [vmem:[%s186] sm:$0xff]
        %v220 = vld [vmem:[%s186 + $0x8] sm:$0xff]
        %v221 = vld [vmem:[%s186 + $0x10] sm:$0xff]
        %v222 = vld [vmem:[%s186 + $0x18] sm:$0xff]
        %v223 = vld [vmem:[%s186 + $0x20] sm:$0xff]
        %v224 = vld [vmem:[%s186 + $0x28] sm:$0xff]
        %v225 = vld [vmem:[%s186 + $0x30] sm:$0xff]
        %v226 = vld [vmem:[%s186 + $0x38] sm:$0xff]
        %v227 = vld [vmem:[#allocation7] sm:$0xff]
        %v228 = vld [vmem:[#allocation7 + $0x8] sm:$0xff]
        %vm229 = vcmask 130048
        %v231 = vsel %vm229, %v219, 0
        %v234 = vsel %vm229, %v220, 0
        %v237 = vsel %vm229, %v221, 0
        %v240 = vsel %vm229, %v222, 0
        %v243 = vsel %vm229, %v223, 0
        %v246 = vsel %vm229, %v224, 0
        %v249 = vsel %vm229, %v225, 0
        %v252 = vsel %vm229, %v226, 0
        %254 = vmatprep.subr.mxu0 0.0
        %255 = vmatpush1.msra.mxu0 %v227
        %256 = vmatprep.subr.mxu0 0.0
        %257 = vmatpush1.msra.mxu0 %v228
        %258 = vmatprep.subr.mxu0 0.0
        %259 = vmatpush1.msra.mxu0 0.0
        %260 = vmatprep.subr.mxu0 0.0
        %261 = vmatpush1.msra.mxu0 0.0
        %262 = vmatprep.subr.mxu0 0.0
        %263 = vmatpush1.msra.mxu0 0.0
        %264 = vmatprep.subr.mxu0 0.0
        %265 = vmatpush1.msra.mxu0 0.0
        %266 = vmatprep.subr.mxu0 0.0
        %267 = vmatpush1.msra.mxu0 0.0
        %268 = vmatprep.subr.mxu0 0.0
        %269 = vmatpush1.msra.mxu0 0.0
        %270 = vmatprep.subr.mxu0 0.0
        %271 = vmatpush1.msra.mxu0 0.0
        %272 = vmatprep.subr.mxu0 0.0
        %273 = vmatpush1.msra.mxu0 0.0
        %274 = vmatprep.subr.mxu0 0.0
        %275 = vmatpush1.msra.mxu0 0.0
        %276 = vmatprep.subr.mxu0 0.0
        %277 = vmatpush1.msra.mxu0 0.0
        %278 = vmatprep.subr.mxu0 0.0
        %279 = vmatpush1.msra.mxu0 0.0
        %280 = vmatprep.subr.mxu0 0.0
        %281 = vmatpush1.msra.mxu0 0.0
        %282 = vmatprep.subr.mxu0 0.0
        %283 = vmatpush1.msra.mxu0 0.0
        %284 = vmatprep.subr.mxu0 0.0
        %285 = vmatpush1.msra.mxu0 0.0
        %286 = vmatprep.subr.mxu0 0.0
        %287 = vmatpush1.msra.mxu0 0.0
        %288 = vmatprep.subr.mxu0 0.0
        %289 = vmatpush1.msra.mxu0 0.0
        %290 = vmatprep.subr.mxu0 0.0
        %291 = vmatpush1.msra.mxu0 0.0
        %292 = vmatprep.subr.mxu0 0.0
        %293 = vmatpush1.msra.mxu0 0.0
        %294 = vmatprep.subr.mxu0 0.0
        %295 = vmatpush1.msra.mxu0 0.0
        %296 = vmatprep.subr.mxu0 0.0
        %297 = vmatpush1.msra.mxu0 0.0
        %298 = vmatprep.subr.mxu0 0.0
        %299 = vmatpush1.msra.mxu0 0.0
        %300 = vmatprep.subr.mxu0 0.0
        %301 = vmatpush1.msra.mxu0 0.0
        %302 = vmatprep.subr.mxu0 0.0
        %303 = vmatpush1.msra.mxu0 0.0
        %304 = vmatprep.subr.mxu0 0.0
        %305 = vmatpush1.msra.mxu0 0.0
        %306 = vmatprep.subr.mxu0 0.0
        %307 = vmatpush1.msra.mxu0 0.0
        %308 = vmatprep.subr.mxu0 0.0
        %309 = vmatpush1.msra.mxu0 0.0
        %310 = vmatprep.subr.mxu0 0.0
        %311 = vmatpush1.msra.mxu0 0.0
        %312 = vmatprep.subr.mxu0 0.0
        %313 = vmatpush1.msra.mxu0 0.0
        %314 = vmatprep.subr.mxu0 0.0
        %315 = vmatpush1.msra.mxu0 0.0
        %316 = vmatprep.subr.mxu0 0.0
        %317 = vmatpush1.msra.mxu0 0.0
        %318 = vmatprep.mubr.f32.mxu0 0.0
        %319 = vmatmul.mubr.f32.gmra.mrb[0].mxu0 %v231
        %v320 = vpop.f32.mrb[0].mxu0
        %v321 = vadd.f32 0.0, %v320
        %v322 = vpop.f32.mrb[0].mxu0
        %323 = vmatprep.mubr.f32.mxu0 0.0
        %324 = vmatmul.mubr.f32.gmra.mrb[0].mxu0 %v234
        %v325 = vpop.f32.mrb[0].mxu0
        %v326 = vadd.f32 0.0, %v325
        %v327 = vpop.f32.mrb[0].mxu0
        %328 = vmatprep.mubr.f32.mxu0 0.0
        %329 = vmatmul.mubr.f32.gmra.mrb[0].mxu0 %v237
        %v330 = vpop.f32.mrb[0].mxu0
        %v331 = vadd.f32 0.0, %v330
        %v332 = vpop.f32.mrb[0].mxu0
        %333 = vmatprep.mubr.f32.mxu0 0.0
        %334 = vmatmul.mubr.f32.gmra.mrb[0].mxu0 %v240
        %v335 = vpop.f32.mrb[0].mxu0
        %v336 = vadd.f32 0.0, %v335
        %v337 = vpop.f32.mrb[0].mxu0
        %338 = vmatprep.mubr.f32.mxu0 0.0
        %339 = vmatmul.mubr.f32.gmra.mrb[0].mxu0 %v243
        %v340 = vpop.f32.mrb[0].mxu0
        %v341 = vadd.f32 0.0, %v340
        %v342 = vpop.f32.mrb[0].mxu0
        %343 = vmatprep.mubr.f32.mxu0 0.0
        %344 = vmatmul.mubr.f32.gmra.mrb[0].mxu0 %v246
        %v345 = vpop.f32.mrb[0].mxu0
        %v346 = vadd.f32 0.0, %v345
        %v347 = vpop.f32.mrb[0].mxu0
        %348 = vmatprep.mubr.f32.mxu0 0.0
        %349 = vmatmul.mubr.f32.gmra.mrb[0].mxu0 %v249
        %v350 = vpop.f32.mrb[0].mxu0
        %v351 = vadd.f32 0.0, %v350
        %v352 = vpop.f32.mrb[0].mxu0
        %353 = vmatprep.mubr.f32.mxu0 0.0
        %354 = vmatmul.mubr.f32.gmra.mrb[0].mxu0 %v252
        %v355 = vpop.f32.mrb[0].mxu0
        %v356 = vadd.f32 0.0, %v355
        %v357 = vpop.f32.mrb[0].mxu0
        %358 = vdwg.mxu0
        %v359 = vld [vmem:[#allocation5] sm:$0xff]
        %360 = vxpose.xlu0.b32.start [1/16] %v321, 128
        %361 = vxpose.xlu0.b32.cont [2/16] %v326, 128
        %362 = vxpose.xlu0.b32.cont [3/16] 0.0, 128
        %363 = vxpose.xlu0.b32.cont [4/16] 0.0, 128
        %364 = vxpose.xlu0.b32.cont [5/16] 0.0, 128
        %365 = vxpose.xlu0.b32.cont [6/16] 0.0, 128
        %366 = vxpose.xlu0.b32.cont [7/16] 0.0, 128
        %367 = vxpose.xlu0.b32.cont [8/16] 0.0, 128
        %368 = vxpose.xlu0.b32.cont [9/16] 0.0, 128
        %369 = vxpose.xlu0.b32.cont [10/16] 0.0, 128
        %370 = vxpose.xlu0.b32.cont [11/16] 0.0, 128
        %371 = vxpose.xlu0.b32.cont [12/16] 0.0, 128
        %372 = vxpose.xlu0.b32.cont [13/16] 0.0, 128
        %373 = vxpose.xlu0.b32.cont [14/16] 0.0, 128
        %374 = vxpose.xlu0.b32.cont [15/16] 0.0, 128
        %375 = vxpose.xlu0.b32.end [16/16] 0.0, 128
        %v376 = vpop.trf.xlu0
        %v377 = vpop.trf.xlu0
        %v378 = vpop.trf.xlu0
        %v379 = vpop.trf.xlu0
        %v380 = vpop.trf.xlu0
        %v381 = vpop.trf.xlu0
        %v382 = vpop.trf.xlu0
        %v383 = vpop.trf.xlu0
        %v384 = vpop.trf.xlu0
        %v385 = vpop.trf.xlu0
        %v386 = vpop.trf.xlu0
        %v387 = vpop.trf.xlu0
        %v388 = vpop.trf.xlu0
        %v389 = vpop.trf.xlu0
        %v390 = vpop.trf.xlu0
        %v391 = vpop.trf.xlu0
        %392 = vxpose.xlu0.b32.start [1/16] %v331, 128
        %393 = vxpose.xlu0.b32.cont [2/16] %v336, 128
        %394 = vxpose.xlu0.b32.cont [3/16] 0.0, 128
        %395 = vxpose.xlu0.b32.cont [4/16] 0.0, 128
        %396 = vxpose.xlu0.b32.cont [5/16] 0.0, 128
        %397 = vxpose.xlu0.b32.cont [6/16] 0.0, 128
        %398 = vxpose.xlu0.b32.cont [7/16] 0.0, 128
        %399 = vxpose.xlu0.b32.cont [8/16] 0.0, 128
        %400 = vxpose.xlu0.b32.cont [9/16] 0.0, 128
        %401 = vxpose.xlu0.b32.cont [10/16] 0.0, 128
        %402 = vxpose.xlu0.b32.cont [11/16] 0.0, 128
        %403 = vxpose.xlu0.b32.cont [12/16] 0.0, 128
        %404 = vxpose.xlu0.b32.cont [13/16] 0.0, 128
        %405 = vxpose.xlu0.b32.cont [14/16] 0.0, 128
        %406 = vxpose.xlu0.b32.cont [15/16] 0.0, 128
        %407 = vxpose.xlu0.b32.end [16/16] 0.0, 128
        %v408 = vpop.trf.xlu0
        %v409 = vpop.trf.xlu0
        %v410 = vpop.trf.xlu0
        %v411 = vpop.trf.xlu0
        %v412 = vpop.trf.xlu0
        %v413 = vpop.trf.xlu0
        %v414 = vpop.trf.xlu0
        %v415 = vpop.trf.xlu0
        %v416 = vpop.trf.xlu0
        %v417 = vpop.trf.xlu0
        %v418 = vpop.trf.xlu0
        %v419 = vpop.trf.xlu0
        %v420 = vpop.trf.xlu0
        %v421 = vpop.trf.xlu0
        %v422 = vpop.trf.xlu0
        %v423 = vpop.trf.xlu0
        %424 = vxpose.xlu0.b32.start [1/16] %v341, 128
        %425 = vxpose.xlu0.b32.cont [2/16] %v346, 128
        %426 = vxpose.xlu0.b32.cont [3/16] 0.0, 128
        %427 = vxpose.xlu0.b32.cont [4/16] 0.0, 128
        %428 = vxpose.xlu0.b32.cont [5/16] 0.0, 128
        %429 = vxpose.xlu0.b32.cont [6/16] 0.0, 128
        %430 = vxpose.xlu0.b32.cont [7/16] 0.0, 128
        %431 = vxpose.xlu0.b32.cont [8/16] 0.0, 128
        %432 = vxpose.xlu0.b32.cont [9/16] 0.0, 128
        %433 = vxpose.xlu0.b32.cont [10/16] 0.0, 128
        %434 = vxpose.xlu0.b32.cont [11/16] 0.0, 128
        %435 = vxpose.xlu0.b32.cont [12/16] 0.0, 128
        %436 = vxpose.xlu0.b32.cont [13/16] 0.0, 128
        %437 = vxpose.xlu0.b32.cont [14/16] 0.0, 128
        %438 = vxpose.xlu0.b32.cont [15/16] 0.0, 128
        %439 = vxpose.xlu0.b32.end [16/16] 0.0, 128
        %v440 = vpop.trf.xlu0
        %v441 = vpop.trf.xlu0
        %v442 = vpop.trf.xlu0
        %v443 = vpop.trf.xlu0
        %v444 = vpop.trf.xlu0
        %v445 = vpop.trf.xlu0
        %v446 = vpop.trf.xlu0
        %v447 = vpop.trf.xlu0
        %v448 = vpop.trf.xlu0
        %v449 = vpop.trf.xlu0
        %v450 = vpop.trf.xlu0
        %v451 = vpop.trf.xlu0
        %v452 = vpop.trf.xlu0
        %v453 = vpop.trf.xlu0
        %v454 = vpop.trf.xlu0
        %v455 = vpop.trf.xlu0
        %456 = vxpose.xlu0.b32.start [1/16] %v351, 128
        %457 = vxpose.xlu0.b32.cont [2/16] %v356, 128
        %458 = vxpose.xlu0.b32.cont [3/16] 0.0, 128
        %459 = vxpose.xlu0.b32.cont [4/16] 0.0, 128
        %460 = vxpose.xlu0.b32.cont [5/16] 0.0, 128
        %461 = vxpose.xlu0.b32.cont [6/16] 0.0, 128
        %462 = vxpose.xlu0.b32.cont [7/16] 0.0, 128
        %463 = vxpose.xlu0.b32.cont [8/16] 0.0, 128
        %464 = vxpose.xlu0.b32.cont [9/16] 0.0, 128
        %465 = vxpose.xlu0.b32.cont [10/16] 0.0, 128
        %466 = vxpose.xlu0.b32.cont [11/16] 0.0, 128
        %467 = vxpose.xlu0.b32.cont [12/16] 0.0, 128
        %468 = vxpose.xlu0.b32.cont [13/16] 0.0, 128
        %469 = vxpose.xlu0.b32.cont [14/16] 0.0, 128
        %470 = vxpose.xlu0.b32.cont [15/16] 0.0, 128
        %471 = vxpose.xlu0.b32.end [16/16] 0.0, 128
        %v472 = vpop.trf.xlu0
        %v473 = vpop.trf.xlu0
        %v474 = vpop.trf.xlu0
        %v475 = vpop.trf.xlu0
        %v476 = vpop.trf.xlu0
        %v477 = vpop.trf.xlu0
        %v478 = vpop.trf.xlu0
        %v479 = vpop.trf.xlu0
        %v480 = vpop.trf.xlu0
        %v481 = vpop.trf.xlu0
        %v482 = vpop.trf.xlu0
        %v483 = vpop.trf.xlu0
        %v484 = vpop.trf.xlu0
        %v485 = vpop.trf.xlu0
        %v486 = vpop.trf.xlu0
        %v487 = vpop.trf.xlu0
        %v489 = vsel %vm229, %v376, 0
        %v492 = vsel %vm229, %v377, 0
        %v495 = vsel %vm229, %v378, 0
        %v498 = vsel %vm229, %v379, 0
        %v501 = vsel %vm229, %v380, 0
        %v504 = vsel %vm229, %v381, 0
        %v507 = vsel %vm229, %v382, 0
        %v510 = vsel %vm229, %v383, 0
        %v513 = vsel %vm229, %v384, 0
        %v516 = vsel %vm229, %v385, 0
        %v519 = vsel %vm229, %v386, 0
        %v522 = vsel %vm229, %v387, 0
        %v525 = vsel %vm229, %v388, 0
        %v528 = vsel %vm229, %v389, 0
        %v531 = vsel %vm229, %v390, 0
        %v534 = vsel %vm229, %v391, 0
        %v537 = vsel %vm229, %v408, 0
        %v540 = vsel %vm229, %v409, 0
        %v543 = vsel %vm229, %v410, 0
        %v546 = vsel %vm229, %v411, 0
        %v549 = vsel %vm229, %v412, 0
        %v552 = vsel %vm229, %v413, 0
        %v555 = vsel %vm229, %v414, 0
        %v558 = vsel %vm229, %v415, 0
        %v561 = vsel %vm229, %v416, 0
        %v564 = vsel %vm229, %v417, 0
        %v567 = vsel %vm229, %v418, 0
        %v570 = vsel %vm229, %v419, 0
        %v573 = vsel %vm229, %v420, 0
        %v576 = vsel %vm229, %v421, 0
        %v579 = vsel %vm229, %v422, 0
        %v582 = vsel %vm229, %v423, 0
        %v585 = vsel %vm229, %v440, 0
        %v588 = vsel %vm229, %v441, 0
        %v591 = vsel %vm229, %v442, 0
        %v594 = vsel %vm229, %v443, 0
        %v597 = vsel %vm229, %v444, 0
        %v600 = vsel %vm229, %v445, 0
        %v603 = vsel %vm229, %v446, 0
        %v606 = vsel %vm229, %v447, 0
        %v609 = vsel %vm229, %v448, 0
        %v612 = vsel %vm229, %v449, 0
        %v615 = vsel %vm229, %v450, 0
        %v618 = vsel %vm229, %v451, 0
        %v621 = vsel %vm229, %v452, 0
        %v624 = vsel %vm229, %v453, 0
        %v627 = vsel %vm229, %v454, 0
        %v630 = vsel %vm229, %v455, 0
        %v633 = vsel %vm229, %v472, 0
        %v636 = vsel %vm229, %v473, 0
        %v639 = vsel %vm229, %v474, 0
        %v642 = vsel %vm229, %v475, 0
        %v645 = vsel %vm229, %v476, 0
        %v648 = vsel %vm229, %v477, 0
        %v651 = vsel %vm229, %v478, 0
        %v654 = vsel %vm229, %v479, 0
        %v657 = vsel %vm229, %v480, 0
        %v660 = vsel %vm229, %v481, 0
        %v663 = vsel %vm229, %v482, 0
        %v666 = vsel %vm229, %v483, 0
        %v669 = vsel %vm229, %v484, 0
        %v672 = vsel %vm229, %v485, 0
        %v675 = vsel %vm229, %v486, 0
        %v678 = vsel %vm229, %v487, 0
        %v681 = vsel %vm229, %v359, 0
        %683 = vmatprep.subr.mxu0 0.0
        %684 = vmatpush1.xpose.msra.mxu0 %v681
        %685 = vmatprep.subr.mxu0 0.0
        %686 = vmatpush1.xpose.msra.mxu0 0.0
        %687 = vmatprep.subr.mxu0 0.0
        %688 = vmatpush1.xpose.msra.mxu0 0.0
        %689 = vmatprep.subr.mxu0 0.0
        %690 = vmatpush1.xpose.msra.mxu0 0.0
        %691 = vmatprep.subr.mxu0 0.0
        %692 = vmatpush1.xpose.msra.mxu0 0.0
        %693 = vmatprep.subr.mxu0 0.0
        %694 = vmatpush1.xpose.msra.mxu0 0.0
        %695 = vmatprep.subr.mxu0 0.0
        %696 = vmatpush1.xpose.msra.mxu0 0.0
        %697 = vmatprep.subr.mxu0 0.0
        %698 = vmatpush1.xpose.msra.mxu0 0.0
        %699 = vmatprep.subr.mxu0 0.0
        %700 = vmatpush1.xpose.msra.mxu0 0.0
        %701 = vmatprep.subr.mxu0 0.0
        %702 = vmatpush1.xpose.msra.mxu0 0.0
        %703 = vmatprep.subr.mxu0 0.0
        %704 = vmatpush1.xpose.msra.mxu0 0.0
        %705 = vmatprep.subr.mxu0 0.0
        %706 = vmatpush1.xpose.msra.mxu0 0.0
        %707 = vmatprep.subr.mxu0 0.0
        %708 = vmatpush1.xpose.msra.mxu0 0.0
        %709 = vmatprep.subr.mxu0 0.0
        %710 = vmatpush1.xpose.msra.mxu0 0.0
        %711 = vmatprep.subr.mxu0 0.0
        %712 = vmatpush1.xpose.msra.mxu0 0.0
        %713 = vmatprep.subr.mxu0 0.0
        %714 = vmatpush1.xpose.msra.mxu0 0.0
        %715 = vmatprep.subr.mxu0 0.0
        %716 = vmatpush1.xpose.msra.mxu0 0.0
        %717 = vmatprep.subr.mxu0 0.0
        %718 = vmatpush1.xpose.msra.mxu0 0.0
        %719 = vmatprep.subr.mxu0 0.0
        %720 = vmatpush1.xpose.msra.mxu0 0.0
        %721 = vmatprep.subr.mxu0 0.0
        %722 = vmatpush1.xpose.msra.mxu0 0.0
        %723 = vmatprep.subr.mxu0 0.0
        %724 = vmatpush1.xpose.msra.mxu0 0.0
        %725 = vmatprep.subr.mxu0 0.0
        %726 = vmatpush1.xpose.msra.mxu0 0.0
        %727 = vmatprep.subr.mxu0 0.0
        %728 = vmatpush1.xpose.msra.mxu0 0.0
        %729 = vmatprep.subr.mxu0 0.0
        %730 = vmatpush1.xpose.msra.mxu0 0.0
        %731 = vmatprep.subr.mxu0 0.0
        %732 = vmatpush1.xpose.msra.mxu0 0.0
        %733 = vmatprep.subr.mxu0 0.0
        %734 = vmatpush1.xpose.msra.mxu0 0.0
        %735 = vmatprep.subr.mxu0 0.0
        %736 = vmatpush1.xpose.msra.mxu0 0.0
        %737 = vmatprep.subr.mxu0 0.0
        %738 = vmatpush1.xpose.msra.mxu0 0.0
        %739 = vmatprep.subr.mxu0 0.0
        %740 = vmatpush1.xpose.msra.mxu0 0.0
        %741 = vmatprep.subr.mxu0 0.0
        %742 = vmatpush1.xpose.msra.mxu0 0.0
        %743 = vmatprep.subr.mxu0 0.0
        %744 = vmatpush1.xpose.msra.mxu0 0.0
        %745 = vmatprep.subr.mxu0 0.0
        %746 = vmatpush1.xpose.msra.mxu0 0.0
        %747 = vmatprep.mubr.f32.mxu0 0.0
        %748 = vmatmul.mubr.f32.gmra.mrb[0].mxu0 %v489
        %v749 = vpop.f32.mrb[0].mxu0
        %v750 = vadd.f32 0.0, %v749
        %v751 = vpop.f32.mrb[0].mxu0
        %752 = vmatprep.mubr.f32.mxu0 0.0
        %753 = vmatmul.mubr.f32.gmra.mrb[0].mxu0 %v492
        %v754 = vpop.f32.mrb[0].mxu0
        %v755 = vadd.f32 0.0, %v754
        %v756 = vpop.f32.mrb[0].mxu0
        %757 = vmatprep.mubr.f32.mxu0 0.0
        %758 = vmatmul.mubr.f32.gmra.mrb[0].mxu0 %v495
        %v759 = vpop.f32.mrb[0].mxu0
        %v760 = vadd.f32 0.0, %v759
        %v761 = vpop.f32.mrb[0].mxu0
        %762 = vmatprep.mubr.f32.mxu0 0.0
        %763 = vmatmul.mubr.f32.gmra.mrb[0].mxu0 %v498
        %v764 = vpop.f32.mrb[0].mxu0
        %v765 = vadd.f32 0.0, %v764
        %v766 = vpop.f32.mrb[0].mxu0
        %767 = vmatprep.mubr.f32.mxu0 0.0
        %768 = vmatmul.mubr.f32.gmra.mrb[0].mxu0 %v501
        %v769 = vpop.f32.mrb[0].mxu0
        %v770 = vadd.f32 0.0, %v769
        %v771 = vpop.f32.mrb[0].mxu0
        %772 = vmatprep.mubr.f32.mxu0 0.0
        %773 = vmatmul.mubr.f32.gmra.mrb[0].mxu0 %v504
        %v774 = vpop.f32.mrb[0].mxu0
        %v775 = vadd.f32 0.0, %v774
        %v776 = vpop.f32.mrb[0].mxu0
        %777 = vmatprep.mubr.f32.mxu0 0.0
        %778 = vmatmul.mubr.f32.gmra.mrb[0].mxu0 %v507
        %v779 = vpop.f32.mrb[0].mxu0
        %v780 = vadd.f32 0.0, %v779
        %v781 = vpop.f32.mrb[0].mxu0
        %782 = vmatprep.mubr.f32.mxu0 0.0
        %783 = vmatmul.mubr.f32.gmra.mrb[0].mxu0 %v510
        %v784 = vpop.f32.mrb[0].mxu0
        %v785 = vadd.f32 0.0, %v784
        %v786 = vpop.f32.mrb[0].mxu0
        %787 = vmatprep.mubr.f32.mxu0 0.0
        %788 = vmatmul.mubr.f32.gmra.mrb[0].mxu0 %v513
        %v789 = vpop.f32.mrb[0].mxu0
        %v790 = vadd.f32 0.0, %v789
        %v791 = vpop.f32.mrb[0].mxu0
        %792 = vmatprep.mubr.f32.mxu0 0.0
        %793 = vmatmul.mubr.f32.gmra.mrb[0].mxu0 %v516
        %v794 = vpop.f32.mrb[0].mxu0
        %v795 = vadd.f32 0.0, %v794
        %v796 = vpop.f32.mrb[0].mxu0
        %797 = vmatprep.mubr.f32.mxu0 0.0
        %798 = vmatmul.mubr.f32.gmra.mrb[0].mxu0 %v519
        %v799 = vpop.f32.mrb[0].mxu0
        %v800 = vadd.f32 0.0, %v799
        %v801 = vpop.f32.mrb[0].mxu0
        %802 = vmatprep.mubr.f32.mxu0 0.0
        %803 = vmatmul.mubr.f32.gmra.mrb[0].mxu0 %v522
        %v804 = vpop.f32.mrb[0].mxu0
        %v805 = vadd.f32 0.0, %v804
        %v806 = vpop.f32.mrb[0].mxu0
        %807 = vmatprep.mubr.f32.mxu0 0.0
        %808 = vmatmul.mubr.f32.gmra.mrb[0].mxu0 %v525
        %v809 = vpop.f32.mrb[0].mxu0
        %v810 = vadd.f32 0.0, %v809
        %v811 = vpop.f32.mrb[0].mxu0
        %812 = vmatprep.mubr.f32.mxu0 0.0
        %813 = vmatmul.mubr.f32.gmra.mrb[0].mxu0 %v528
        %v814 = vpop.f32.mrb[0].mxu0
        %v815 = vadd.f32 0.0, %v814
        %v816 = vpop.f32.mrb[0].mxu0
        %817 = vmatprep.mubr.f32.mxu0 0.0
        %818 = vmatmul.mubr.f32.gmra.mrb[0].mxu0 %v531
        %v819 = vpop.f32.mrb[0].mxu0
        %v820 = vadd.f32 0.0, %v819
        %v821 = vpop.f32.mrb[0].mxu0
        %822 = vmatprep.mubr.f32.mxu0 0.0
        %823 = vmatmul.mubr.f32.gmra.mrb[0].mxu0 %v534
        %v824 = vpop.f32.mrb[0].mxu0
        %v825 = vadd.f32 0.0, %v824
        %v826 = vpop.f32.mrb[0].mxu0
        %827 = vmatprep.mubr.f32.mxu0 0.0
        %828 = vmatmul.mubr.f32.gmra.mrb[0].mxu0 %v537
        %v829 = vpop.f32.mrb[0].mxu0
        %v830 = vadd.f32 0.0, %v829
        %v831 = vpop.f32.mrb[0].mxu0
        %832 = vmatprep.mubr.f32.mxu0 0.0
        %833 = vmatmul.mubr.f32.gmra.mrb[0].mxu0 %v540
        %v834 = vpop.f32.mrb[0].mxu0
        %v835 = vadd.f32 0.0, %v834
        %v836 = vpop.f32.mrb[0].mxu0
        %837 = vmatprep.mubr.f32.mxu0 0.0
        %838 = vmatmul.mubr.f32.gmra.mrb[0].mxu0 %v543
        %v839 = vpop.f32.mrb[0].mxu0
        %v840 = vadd.f32 0.0, %v839
        %v841 = vpop.f32.mrb[0].mxu0
        %842 = vmatprep.mubr.f32.mxu0 0.0
        %843 = vmatmul.mubr.f32.gmra.mrb[0].mxu0 %v546
        %v844 = vpop.f32.mrb[0].mxu0
        %v845 = vadd.f32 0.0, %v844
        %v846 = vpop.f32.mrb[0].mxu0
        %847 = vmatprep.mubr.f32.mxu0 0.0
        %848 = vmatmul.mubr.f32.gmra.mrb[0].mxu0 %v549
        %v849 = vpop.f32.mrb[0].mxu0
        %v850 = vadd.f32 0.0, %v849
        %v851 = vpop.f32.mrb[0].mxu0
        %852 = vmatprep.mubr.f32.mxu0 0.0
        %853 = vmatmul.mubr.f32.gmra.mrb[0].mxu0 %v552
        %v854 = vpop.f32.mrb[0].mxu0
        %v855 = vadd.f32 0.0, %v854
        %v856 = vpop.f32.mrb[0].mxu0
        %857 = vmatprep.mubr.f32.mxu0 0.0
        %858 = vmatmul.mubr.f32.gmra.mrb[0].mxu0 %v555
        %v859 = vpop.f32.mrb[0].mxu0
        %v860 = vadd.f32 0.0, %v859
        %v861 = vpop.f32.mrb[0].mxu0
        %862 = vmatprep.mubr.f32.mxu0 0.0
        %863 = vmatmul.mubr.f32.gmra.mrb[0].mxu0 %v558
        %v864 = vpop.f32.mrb[0].mxu0
        %v865 = vadd.f32 0.0, %v864
        %v866 = vpop.f32.mrb[0].mxu0
        %867 = vmatprep.mubr.f32.mxu0 0.0
        %868 = vmatmul.mubr.f32.gmra.mrb[0].mxu0 %v561
        %v869 = vpop.f32.mrb[0].mxu0
        %v870 = vadd.f32 0.0, %v869
        %v871 = vpop.f32.mrb[0].mxu0
        %872 = vmatprep.mubr.f32.mxu0 0.0
        %873 = vmatmul.mubr.f32.gmra.mrb[0].mxu0 %v564
        %v874 = vpop.f32.mrb[0].mxu0
        %v875 = vadd.f32 0.0, %v874
        %v876 = vpop.f32.mrb[0].mxu0
        %877 = vmatprep.mubr.f32.mxu0 0.0
        %878 = vmatmul.mubr.f32.gmra.mrb[0].mxu0 %v567
        %v879 = vpop.f32.mrb[0].mxu0
        %v880 = vadd.f32 0.0, %v879
        %v881 = vpop.f32.mrb[0].mxu0
        %882 = vmatprep.mubr.f32.mxu0 0.0
        %883 = vmatmul.mubr.f32.gmra.mrb[0].mxu0 %v570
        %v884 = vpop.f32.mrb[0].mxu0
        %v885 = vadd.f32 0.0, %v884
        %v886 = vpop.f32.mrb[0].mxu0
        %887 = vmatprep.mubr.f32.mxu0 0.0
        %888 = vmatmul.mubr.f32.gmra.mrb[0].mxu0 %v573
        %v889 = vpop.f32.mrb[0].mxu0
        %v890 = vadd.f32 0.0, %v889
        %v891 = vpop.f32.mrb[0].mxu0
        %892 = vmatprep.mubr.f32.mxu0 0.0
        %893 = vmatmul.mubr.f32.gmra.mrb[0].mxu0 %v576
        %v894 = vpop.f32.mrb[0].mxu0
        %v895 = vadd.f32 0.0, %v894
        %v896 = vpop.f32.mrb[0].mxu0
        %897 = vmatprep.mubr.f32.mxu0 0.0
        %898 = vmatmul.mubr.f32.gmra.mrb[0].mxu0 %v579
        %v899 = vpop.f32.mrb[0].mxu0
        %v900 = vadd.f32 0.0, %v899
        %v901 = vpop.f32.mrb[0].mxu0
        %902 = vmatprep.mubr.f32.mxu0 0.0
        %903 = vmatmul.mubr.f32.gmra.mrb[0].mxu0 %v582
        %v904 = vpop.f32.mrb[0].mxu0
        %v905 = vadd.f32 0.0, %v904
        %v906 = vpop.f32.mrb[0].mxu0
        %907 = vmatprep.mubr.f32.mxu0 0.0
        %908 = vmatmul.mubr.f32.gmra.mrb[0].mxu0 %v585
        %v909 = vpop.f32.mrb[0].mxu0
        %v910 = vadd.f32 0.0, %v909
        %v911 = vpop.f32.mrb[0].mxu0
        %912 = vmatprep.mubr.f32.mxu0 0.0
        %913 = vmatmul.mubr.f32.gmra.mrb[0].mxu0 %v588
        %v914 = vpop.f32.mrb[0].mxu0
        %v915 = vadd.f32 0.0, %v914
        %v916 = vpop.f32.mrb[0].mxu0
        %917 = vmatprep.mubr.f32.mxu0 0.0
        %918 = vmatmul.mubr.f32.gmra.mrb[0].mxu0 %v591
        %v919 = vpop.f32.mrb[0].mxu0
        %v920 = vadd.f32 0.0, %v919
        %v921 = vpop.f32.mrb[0].mxu0
        %922 = vmatprep.mubr.f32.mxu0 0.0
        %923 = vmatmul.mubr.f32.gmra.mrb[0].mxu0 %v594
        %v924 = vpop.f32.mrb[0].mxu0
        %v925 = vadd.f32 0.0, %v924
        %v926 = vpop.f32.mrb[0].mxu0
        %927 = vmatprep.mubr.f32.mxu0 0.0
        %928 = vmatmul.mubr.f32.gmra.mrb[0].mxu0 %v597
        %v929 = vpop.f32.mrb[0].mxu0
        %v930 = vadd.f32 0.0, %v929
        %v931 = vpop.f32.mrb[0].mxu0
        %932 = vmatprep.mubr.f32.mxu0 0.0
        %933 = vmatmul.mubr.f32.gmra.mrb[0].mxu0 %v600
        %v934 = vpop.f32.mrb[0].mxu0
        %v935 = vadd.f32 0.0, %v934
        %v936 = vpop.f32.mrb[0].mxu0
        %937 = vmatprep.mubr.f32.mxu0 0.0
        %938 = vmatmul.mubr.f32.gmra.mrb[0].mxu0 %v603
        %v939 = vpop.f32.mrb[0].mxu0
        %v940 = vadd.f32 0.0, %v939
        %v941 = vpop.f32.mrb[0].mxu0
        %942 = vmatprep.mubr.f32.mxu0 0.0
        %943 = vmatmul.mubr.f32.gmra.mrb[0].mxu0 %v606
        %v944 = vpop.f32.mrb[0].mxu0
        %v945 = vadd.f32 0.0, %v944
        %v946 = vpop.f32.mrb[0].mxu0
        %947 = vmatprep.mubr.f32.mxu0 0.0
        %948 = vmatmul.mubr.f32.gmra.mrb[0].mxu0 %v609
        %v949 = vpop.f32.mrb[0].mxu0
        %v950 = vadd.f32 0.0, %v949
        %v951 = vpop.f32.mrb[0].mxu0
        %952 = vmatprep.mubr.f32.mxu0 0.0
        %953 = vmatmul.mubr.f32.gmra.mrb[0].mxu0 %v612
        %v954 = vpop.f32.mrb[0].mxu0
        %v955 = vadd.f32 0.0, %v954
        %v956 = vpop.f32.mrb[0].mxu0
        %957 = vmatprep.mubr.f32.mxu0 0.0
        %958 = vmatmul.mubr.f32.gmra.mrb[0].mxu0 %v615
        %v959 = vpop.f32.mrb[0].mxu0
        %v960 = vadd.f32 0.0, %v959
        %v961 = vpop.f32.mrb[0].mxu0
        %962 = vmatprep.mubr.f32.mxu0 0.0
        %963 = vmatmul.mubr.f32.gmra.mrb[0].mxu0 %v618
        %v964 = vpop.f32.mrb[0].mxu0
        %v965 = vadd.f32 0.0, %v964
        %v966 = vpop.f32.mrb[0].mxu0
        %967 = vmatprep.mubr.f32.mxu0 0.0
        %968 = vmatmul.mubr.f32.gmra.mrb[0].mxu0 %v621
        %v969 = vpop.f32.mrb[0].mxu0
        %v970 = vadd.f32 0.0, %v969
        %v971 = vpop.f32.mrb[0].mxu0
        %972 = vmatprep.mubr.f32.mxu0 0.0
        %973 = vmatmul.mubr.f32.gmra.mrb[0].mxu0 %v624
        %v974 = vpop.f32.mrb[0].mxu0
        %v975 = vadd.f32 0.0, %v974
        %v976 = vpop.f32.mrb[0].mxu0
        %977 = vmatprep.mubr.f32.mxu0 0.0
        %978 = vmatmul.mubr.f32.gmra.mrb[0].mxu0 %v627
        %v979 = vpop.f32.mrb[0].mxu0
        %v980 = vadd.f32 0.0, %v979
        %v981 = vpop.f32.mrb[0].mxu0
        %982 = vmatprep.mubr.f32.mxu0 0.0
        %983 = vmatmul.mubr.f32.gmra.mrb[0].mxu0 %v630
        %v984 = vpop.f32.mrb[0].mxu0
        %v985 = vadd.f32 0.0, %v984
        %v986 = vpop.f32.mrb[0].mxu0
        %987 = vmatprep.mubr.f32.mxu0 0.0
        %988 = vmatmul.mubr.f32.gmra.mrb[0].mxu0 %v633
        %v989 = vpop.f32.mrb[0].mxu0
        %v990 = vadd.f32 0.0, %v989
        %v991 = vpop.f32.mrb[0].mxu0
        %992 = vmatprep.mubr.f32.mxu0 0.0
        %993 = vmatmul.mubr.f32.gmra.mrb[0].mxu0 %v636
        %v994 = vpop.f32.mrb[0].mxu0
        %v995 = vadd.f32 0.0, %v994
        %v996 = vpop.f32.mrb[0].mxu0
        %997 = vmatprep.mubr.f32.mxu0 0.0
        %998 = vmatmul.mubr.f32.gmra.mrb[0].mxu0 %v639
        %v999 = vpop.f32.mrb[0].mxu0
        %v1000 = vadd.f32 0.0, %v999
        %v1001 = vpop.f32.mrb[0].mxu0
        %1002 = vmatprep.mubr.f32.mxu0 0.0
        %1003 = vmatmul.mubr.f32.gmra.mrb[0].mxu0 %v642
        %v1004 = vpop.f32.mrb[0].mxu0
        %v1005 = vadd.f32 0.0, %v1004
        %v1006 = vpop.f32.mrb[0].mxu0
        %1007 = vmatprep.mubr.f32.mxu0 0.0
        %1008 = vmatmul.mubr.f32.gmra.mrb[0].mxu0 %v645
        %v1009 = vpop.f32.mrb[0].mxu0
        %v1010 = vadd.f32 0.0, %v1009
        %v1011 = vpop.f32.mrb[0].mxu0
        %1012 = vmatprep.mubr.f32.mxu0 0.0
        %1013 = vmatmul.mubr.f32.gmra.mrb[0].mxu0 %v648
        %v1014 = vpop.f32.mrb[0].mxu0
        %v1015 = vadd.f32 0.0, %v1014
        %v1016 = vpop.f32.mrb[0].mxu0
        %1017 = vmatprep.mubr.f32.mxu0 0.0
        %1018 = vmatmul.mubr.f32.gmra.mrb[0].mxu0 %v651
        %v1019 = vpop.f32.mrb[0].mxu0
        %v1020 = vadd.f32 0.0, %v1019
        %v1021 = vpop.f32.mrb[0].mxu0
        %1022 = vmatprep.mubr.f32.mxu0 0.0
        %1023 = vmatmul.mubr.f32.gmra.mrb[0].mxu0 %v654
        %v1024 = vpop.f32.mrb[0].mxu0
        %v1025 = vadd.f32 0.0, %v1024
        %v1026 = vpop.f32.mrb[0].mxu0
        %1027 = vmatprep.mubr.f32.mxu0 0.0
        %1028 = vmatmul.mubr.f32.gmra.mrb[0].mxu0 %v657
        %v1029 = vpop.f32.mrb[0].mxu0
        %v1030 = vadd.f32 0.0, %v1029
        %v1031 = vpop.f32.mrb[0].mxu0
        %1032 = vmatprep.mubr.f32.mxu0 0.0
        %1033 = vmatmul.mubr.f32.gmra.mrb[0].mxu0 %v660
        %v1034 = vpop.f32.mrb[0].mxu0
        %v1035 = vadd.f32 0.0, %v1034
        %v1036 = vpop.f32.mrb[0].mxu0
        %1037 = vmatprep.mubr.f32.mxu0 0.0
        %1038 = vmatmul.mubr.f32.gmra.mrb[0].mxu0 %v663
        %v1039 = vpop.f32.mrb[0].mxu0
        %v1040 = vadd.f32 0.0, %v1039
        %v1041 = vpop.f32.mrb[0].mxu0
        %1042 = vmatprep.mubr.f32.mxu0 0.0
        %1043 = vmatmul.mubr.f32.gmra.mrb[0].mxu0 %v666
        %v1044 = vpop.f32.mrb[0].mxu0
        %v1045 = vadd.f32 0.0, %v1044
        %v1046 = vpop.f32.mrb[0].mxu0
        %1047 = vmatprep.mubr.f32.mxu0 0.0
        %1048 = vmatmul.mubr.f32.gmra.mrb[0].mxu0 %v669
        %v1049 = vpop.f32.mrb[0].mxu0
        %v1050 = vadd.f32 0.0, %v1049
        %v1051 = vpop.f32.mrb[0].mxu0
        %1052 = vmatprep.mubr.f32.mxu0 0.0
        %1053 = vmatmul.mubr.f32.gmra.mrb[0].mxu0 %v672
        %v1054 = vpop.f32.mrb[0].mxu0
        %v1055 = vadd.f32 0.0, %v1054
        %v1056 = vpop.f32.mrb[0].mxu0
        %1057 = vmatprep.mubr.f32.mxu0 0.0
        %1058 = vmatmul.mubr.f32.gmra.mrb[0].mxu0 %v675
        %v1059 = vpop.f32.mrb[0].mxu0
        %v1060 = vadd.f32 0.0, %v1059
        %v1061 = vpop.f32.mrb[0].mxu0
        %1062 = vmatprep.mubr.f32.mxu0 0.0
        %1063 = vmatmul.mubr.f32.gmra.mrb[0].mxu0 %v678
        %v1064 = vpop.f32.mrb[0].mxu0
        %v1065 = vadd.f32 0.0, %v1064
        %v1066 = vpop.f32.mrb[0].mxu0
        %1067 = vdwg.mxu0
        %1068 = vxpose.xlu0.b32.start [1/16] %v750, 128
        %1069 = vxpose.xlu0.b32.cont [2/16] %v755, 128
        %1070 = vxpose.xlu0.b32.cont [3/16] %v760, 128
        %1071 = vxpose.xlu0.b32.cont [4/16] %v765, 128
        %1072 = vxpose.xlu0.b32.cont [5/16] %v770, 128
        %1073 = vxpose.xlu0.b32.cont [6/16] %v775, 128
        %1074 = vxpose.xlu0.b32.cont [7/16] %v780, 128
        %1075 = vxpose.xlu0.b32.cont [8/16] %v785, 128
        %1076 = vxpose.xlu0.b32.cont [9/16] %v790, 128
        %1077 = vxpose.xlu0.b32.cont [10/16] %v795, 128
        %1078 = vxpose.xlu0.b32.cont [11/16] %v800, 128
        %1079 = vxpose.xlu0.b32.cont [12/16] %v805, 128
        %1080 = vxpose.xlu0.b32.cont [13/16] %v810, 128
        %1081 = vxpose.xlu0.b32.cont [14/16] %v815, 128
        %1082 = vxpose.xlu0.b32.cont [15/16] %v820, 128
        %1083 = vxpose.xlu0.b32.end [16/16] %v825, 128
        %v1084 = vpop.trf.xlu0
        %v1085 = vpop.trf.xlu0
        %v1086 = vpop.trf.xlu0
        %v1087 = vpop.trf.xlu0
        %v1088 = vpop.trf.xlu0
        %v1089 = vpop.trf.xlu0
        %v1090 = vpop.trf.xlu0
        %v1091 = vpop.trf.xlu0
        %v1092 = vpop.trf.xlu0
        %v1093 = vpop.trf.xlu0
        %v1094 = vpop.trf.xlu0
        %v1095 = vpop.trf.xlu0
        %v1096 = vpop.trf.xlu0
        %v1097 = vpop.trf.xlu0
        %v1098 = vpop.trf.xlu0
        %v1099 = vpop.trf.xlu0
        %1100 = vxpose.xlu0.b32.start [1/16] %v830, 128
        %1101 = vxpose.xlu0.b32.cont [2/16] %v835, 128
        %1102 = vxpose.xlu0.b32.cont [3/16] %v840, 128
        %1103 = vxpose.xlu0.b32.cont [4/16] %v845, 128
        %1104 = vxpose.xlu0.b32.cont [5/16] %v850, 128
        %1105 = vxpose.xlu0.b32.cont [6/16] %v855, 128
        %1106 = vxpose.xlu0.b32.cont [7/16] %v860, 128
        %1107 = vxpose.xlu0.b32.cont [8/16] %v865, 128
        %1108 = vxpose.xlu0.b32.cont [9/16] %v870, 128
        %1109 = vxpose.xlu0.b32.cont [10/16] %v875, 128
        %1110 = vxpose.xlu0.b32.cont [11/16] %v880, 128
        %1111 = vxpose.xlu0.b32.cont [12/16] %v885, 128
        %1112 = vxpose.xlu0.b32.cont [13/16] %v890, 128
        %1113 = vxpose.xlu0.b32.cont [14/16] %v895, 128
        %1114 = vxpose.xlu0.b32.cont [15/16] %v900, 128
        %1115 = vxpose.xlu0.b32.end [16/16] %v905, 128
        %v1116 = vpop.trf.xlu0
        %v1117 = vpop.trf.xlu0
        %v1118 = vpop.trf.xlu0
        %v1119 = vpop.trf.xlu0
        %v1120 = vpop.trf.xlu0
        %v1121 = vpop.trf.xlu0
        %v1122 = vpop.trf.xlu0
        %v1123 = vpop.trf.xlu0
        %v1124 = vpop.trf.xlu0
        %v1125 = vpop.trf.xlu0
        %v1126 = vpop.trf.xlu0
        %v1127 = vpop.trf.xlu0
        %v1128 = vpop.trf.xlu0
        %v1129 = vpop.trf.xlu0
        %v1130 = vpop.trf.xlu0
        %v1131 = vpop.trf.xlu0
        %1132 = vxpose.xlu0.b32.start [1/16] %v910, 128
        %1133 = vxpose.xlu0.b32.cont [2/16] %v915, 128
        %1134 = vxpose.xlu0.b32.cont [3/16] %v920, 128
        %1135 = vxpose.xlu0.b32.cont [4/16] %v925, 128
        %1136 = vxpose.xlu0.b32.cont [5/16] %v930, 128
        %1137 = vxpose.xlu0.b32.cont [6/16] %v935, 128
        %1138 = vxpose.xlu0.b32.cont [7/16] %v940, 128
        %1139 = vxpose.xlu0.b32.cont [8/16] %v945, 128
        %1140 = vxpose.xlu0.b32.cont [9/16] %v950, 128
        %1141 = vxpose.xlu0.b32.cont [10/16] %v955, 128
        %1142 = vxpose.xlu0.b32.cont [11/16] %v960, 128
        %1143 = vxpose.xlu0.b32.cont [12/16] %v965, 128
        %1144 = vxpose.xlu0.b32.cont [13/16] %v970, 128
        %1145 = vxpose.xlu0.b32.cont [14/16] %v975, 128
        %1146 = vxpose.xlu0.b32.cont [15/16] %v980, 128
        %1147 = vxpose.xlu0.b32.end [16/16] %v985, 128
        %v1148 = vpop.trf.xlu0
        %v1149 = vpop.trf.xlu0
        %v1150 = vpop.trf.xlu0
        %v1151 = vpop.trf.xlu0
        %v1152 = vpop.trf.xlu0
        %v1153 = vpop.trf.xlu0
        %v1154 = vpop.trf.xlu0
        %v1155 = vpop.trf.xlu0
        %v1156 = vpop.trf.xlu0
        %v1157 = vpop.trf.xlu0
        %v1158 = vpop.trf.xlu0
        %v1159 = vpop.trf.xlu0
        %v1160 = vpop.trf.xlu0
        %v1161 = vpop.trf.xlu0
        %v1162 = vpop.trf.xlu0
        %v1163 = vpop.trf.xlu0
        %1164 = vxpose.xlu0.b32.start [1/16] %v990, 128
        %1165 = vxpose.xlu0.b32.cont [2/16] %v995, 128
        %1166 = vxpose.xlu0.b32.cont [3/16] %v1000, 128
        %1167 = vxpose.xlu0.b32.cont [4/16] %v1005, 128
        %1168 = vxpose.xlu0.b32.cont [5/16] %v1010, 128
        %1169 = vxpose.xlu0.b32.cont [6/16] %v1015, 128
        %1170 = vxpose.xlu0.b32.cont [7/16] %v1020, 128
        %1171 = vxpose.xlu0.b32.cont [8/16] %v1025, 128
        %1172 = vxpose.xlu0.b32.cont [9/16] %v1030, 128
        %1173 = vxpose.xlu0.b32.cont [10/16] %v1035, 128
        %1174 = vxpose.xlu0.b32.cont [11/16] %v1040, 128
        %1175 = vxpose.xlu0.b32.cont [12/16] %v1045, 128
        %1176 = vxpose.xlu0.b32.cont [13/16] %v1050, 128
        %1177 = vxpose.xlu0.b32.cont [14/16] %v1055, 128
        %1178 = vxpose.xlu0.b32.cont [15/16] %v1060, 128
        %1179 = vxpose.xlu0.b32.end [16/16] %v1065, 128
        %v1180 = vpop.trf.xlu0
        %v1181 = vpop.trf.xlu0
        %v1182 = vpop.trf.xlu0
        %v1183 = vpop.trf.xlu0
        %v1184 = vpop.trf.xlu0
        %v1185 = vpop.trf.xlu0
        %v1186 = vpop.trf.xlu0
        %v1187 = vpop.trf.xlu0
        %v1188 = vpop.trf.xlu0
        %v1189 = vpop.trf.xlu0
        %v1190 = vpop.trf.xlu0
        %v1191 = vpop.trf.xlu0
        %v1192 = vpop.trf.xlu0
        %v1193 = vpop.trf.xlu0
        %v1194 = vpop.trf.xlu0
        %v1195 = vpop.trf.xlu0
        %1196 = vst [vmem:[%s216] sm:$0xff] %v1084
        %1197 = vst [vmem:[%s216 + $0x8] sm:$0xff] %v1116
        %1198 = vst [vmem:[%s216 + $0x10] sm:$0xff] %v1148
        %1199 = vst [vmem:[%s216 + $0x18] sm:$0xff] %v1180
        %s1200 = sand.u32 %s97, 1
        %s1201 = scalar_lea.sflag [#allocation4], %s1200
        %s1202 = sand.u32 %s97, 1
        %s1203 = smul.addr %s1202, 32
        %s1204 = scalar_lea.vmem [#allocation8], %s1203
        // Predicated region
        $region45: #{tpu_custom_call.1} parent=31 // pred_check
          %p1205 = pneg %p107
        $region46: #{tpu_custom_call.1} parent=31 // pred_check_branch
          %1207 = sbr.rel (%p1205) target = $region48
        $region47: #{tpu_custom_call.1} parent=31 // pred_region
          %s1208 = smul.u32 4, %s21
          %s1210 = ssub.s32 512, 512
          %1211 = vsyncadd %s1201, %s1210
          %s1212 = smul.addr %s1208, 128
          %s1213 = scalar_lea.hbm %s3, %s1212
          %s1214 = sshll.u32 %s1204, 4
          %s1215 = int_to_ptr.vmem [resolvable:$true] %s1214
          %1220 = dma.vmem_to_hbm [thread:$0]  %s1215, 512, %s1213, %s1201, 128, 128, 8
        $region48: #{tpu_custom_call.1} parent=31 // pred_fallthru
          _
      $region32: #{tpu_custom_call.1} parent=5 // pred_fallthru
        _
      %p1221 = scmp.le.s32.totalorder 2, %s16
      // Predicated region
      $region49: #{tpu_custom_call.1} parent=5 // pred_check
        %p1222 = pneg %p1221
      $region50: #{tpu_custom_call.1} parent=5 // pred_check_branch
        %1224 = sbr.rel (%p1222) target = $region52
      $region51: #{tpu_custom_call.1} parent=5 // pred_region
        %s1225 = ssub.s32 %s16, 2
        // Predicated region
        $region53: #{tpu_custom_call.1} parent=51 // pred_check
          %p1226 = pneg %p113
        $region54: #{tpu_custom_call.1} parent=51 // pred_check_branch
          %1228 = sbr.rel (%p1226) target = $region56
        $region55: #{tpu_custom_call.1} parent=51 // pred_region
          %s1229 = sand.u32 %s98, 1
          %s1230 = scalar_lea.sflag [#allocation4], %s1229
          %s1231 = sand.u32 %s98, 1
          %s1232 = smul.addr %s1231, 32
          %s1233 = scalar_lea.vmem [#allocation8], %s1232
          %1234 = dma.done %s1230, 512
        $region56: #{tpu_custom_call.1} parent=51 // pred_fallthru
          _
      $region52: #{tpu_custom_call.1} parent=5 // pred_fallthru
        _
    $region6: #{tpu_custom_call.1} parent=1 // loop_footer
      %s20 = sadd.s32 1, %s16
    $region7: #{tpu_custom_call.1} parent=1 // loop_footer_branch
      %15 = sbr.rel target = $region3
    $region8: #{tpu_custom_call.1} parent=1 // loop_exit
      _
    %1235 = vsyncpa [#allocation3], 1
    %s1236 = scalar_lea.sflag [#allocation3], 1
    %1237 = vsyncpa %s1236, 1
    %1238 = vsyncpa [#allocation6], 1
    %1239 = vsyncpa [#allocation4], 1
    %s1240 = scalar_lea.sflag [#allocation4], 1
    %1241 = vsyncpa %s1240, 1

</llo_original>
